<compile_context>
chip_gen: v5e
topology: v5e:2x2
jax: 0.10.0
libtpu: 0.0.40
codegen_flags: <defaults>
</compile_context>

<pallas_src>
import functools
import math

import jax
import jax.numpy as jnp
from jax.experimental import pallas as pl
from jax.experimental.pallas import tpu as pltpu


def _round_up(x: int, m: int) -> int:
    return (x + m - 1) // m * m


def _cdiv(a: int, b: int) -> int:
    return (a + b - 1) // b


# -----------------------------------------------------------------------------
# Pass 1: un-normalized logits (streamed to HBM) + per-row log-sum-exp.
# -----------------------------------------------------------------------------
def _logits_lse_kernel(x_ref, w_ref, b_ref, logits_ref, lse_ref,
                       m_ref, s_ref, *acc_refs, nk, tk):
    # x_ref:      (tm, Kp)  full-K resident, fetched once per row tile
    # w_ref:      (tk, tn)  streamed weight tile
    # b_ref:      (1, tn)
    # logits_ref: (tm, tn)  streamed un-normalized logits block
    # lse_ref:    (tm, 1)   f32, written once per row tile
    # m_ref/s_ref:(tm, 1)   f32 running max / running sum-exp
    # acc_refs:   ((tm, tn) f32,) iff nk > 1
    j = pl.program_id(1)
    k = pl.program_id(2)
    nj = pl.num_programs(1)

    if nk == 1:
        x_blk = x_ref[...]
    else:
        x_blk = x_ref[:, pl.ds(pl.multiple_of(k * tk, tk), tk)]

    part = jnp.dot(x_blk, w_ref[...], preferred_element_type=jnp.float32)

    def _finalize(block_f32):
        logits = block_f32 + b_ref[...].astype(jnp.float32)

        @pl.when(j == 0)
        def _():
            m_ref[...] = jnp.full_like(m_ref, -jnp.inf)
            s_ref[...] = jnp.zeros_like(s_ref)

        m_prev = m_ref[...]
        m_new = jnp.maximum(m_prev, jnp.max(logits, axis=-1, keepdims=True))
        # At j == 0: s_prev == 0 and exp(-inf - finite) == 0, so this is exact.
        s_ref[...] = (s_ref[...] * jnp.exp(m_prev - m_new)
                      + jnp.sum(jnp.exp(logits - m_new), axis=-1, keepdims=True))
        m_ref[...] = m_new

        # Stream this un-normalized logits block to HBM (lane-dense stores).
        logits_ref[...] = logits.astype(logits_ref.dtype)

        @pl.when(j == nj - 1)
        def _():
            lse_ref[...] = m_ref[...] + jnp.log(s_ref[...])

    if nk == 1:
        # Single K step: no accumulator scratch / RMW at all.
        _finalize(part)
    else:
        acc_ref = acc_refs[0]

        @pl.when(k == 0)
        def _():
            acc_ref[...] = part          # overwrite: no zero + RMW pass at k==0

        @pl.when(k > 0)
        def _():
            acc_ref[...] += part

        @pl.when(k == nk - 1)
        def _():
            _finalize(acc_ref[...])


# -----------------------------------------------------------------------------
# Pass 2: log_probs = logits - lse, in place over the pass-1 buffer.
# -----------------------------------------------------------------------------
def _normalize_kernel(logits_ref, lse_ref, o_ref):
    o_ref[...] = (logits_ref[...].astype(jnp.float32)
                  - lse_ref[...]).astype(o_ref.dtype)


def _vmem_bytes(tm, tn, tk, kp, x_is, w_is, o_is):
    x_b = 2 * tm * kp * x_is            # double-buffered full-K x row tile
    w_b = 2 * tk * tn * w_is            # double-buffered weight tile
    o_b = 2 * tm * tn * o_is            # double-buffered logits out tile
    acc = tm * tn * 4 if kp > tk else 0  # f32 K accumulator (only if nk > 1)
    misc = 2 * tn * 4 + 6 * tm * 4 + (1 << 20)
    return x_b + w_b + o_b + acc + misc


@functools.partial(jax.jit, static_argnames=("tm", "tn", "tk", "out_dtype"))
def transformer_prediction_layer(x, w_t, bias, *, tm=None, tn=None, tk=None,
                                 out_dtype=None):
    """log_softmax(x @ w_t + bias, axis=-1).

    x:    (..., d_model)
    w_t:  (d_model, vocab)  -- nn.Linear weight pre-transposed (cache this!)
    bias: (vocab,)
    For best TPU performance pass bf16 x / w_t; accumulation is always f32.
    """
    *lead, d_model = x.shape
    lead = tuple(lead)
    d_model_w, vocab = w_t.shape
    assert d_model_w == d_model and bias.shape == (vocab,)
    M = int(math.prod(lead))

    if out_dtype is None:
        out_dtype = x.dtype

    # --- per-generation VMEM budget: physical capacity minus headroom -------
    try:
        phys = int(getattr(pltpu.get_tpu_info(), "vmem_capacity_bytes", 0)) or (128 << 20)
    except Exception:  # pragma: no cover - conservative fallback
        phys = 128 << 20
    budget = min(max(phys - (16 << 20), 32 << 20), 100 << 20)

    # --- tile selection (auto-chosen dims shrink to fit the budget) ---------
    tm_ = min(tm or 512, _round_up(M, 8))
    tn_ = min(tn or 1024, _round_up(vocab, 128))
    tk_ = min(tk or 2048, _round_up(d_model, 128))

    # v7x has 2 TensorCores: keep >= 2 row tiles on the "parallel" axis when
    # each half is still large enough to stay compute-bound.
    if tm is None and M > 256 and _round_up(M, tm_) // tm_ < 2:
        tm_ = _round_up(_cdiv(M, 2), 8)

    x_is = x.dtype.itemsize
    w_is = w_t.dtype.itemsize
    o_is = jnp.dtype(out_dtype).itemsize
    while _vmem_bytes(tm_, tn_, tk_, _round_up(d_model, tk_),
                      x_is, w_is, o_is) > budget:
        if tk is None and tk_ > 256:
            tk_ = max(128, (tk_ // 2) // 128 * 128)
        elif tn is None and tn_ > 256:
            tn_ = max(128, (tn_ // 2) // 128 * 128)
        elif tm is None and tm_ > 64:
            tm_ = max(64, (tm_ // 2) // 8 * 8)
        else:
            break

    Mp = _round_up(M, tm_)
    Kp = _round_up(d_model, tk_)
    Vp = _round_up(vocab, tn_)
    ni, nj, nk = Mp // tm_, Vp // tn_, Kp // tk_

    # --- padding: skipped entirely when shapes are tile-aligned -------------
    # TODO(synk): for ragged vocab/d_model in production, pre-pad and cache the
    # padded (Kp, Vp) weight outside this call (or mask the last tile
    # in-kernel) so the full weight is not copied on every invocation.
    x2 = x.reshape(M, d_model)
    if (Mp, Kp) != (M, d_model):
        x2 = jnp.pad(x2, ((0, Mp - M), (0, Kp - d_model)))
    if (Kp, Vp) != (d_model, vocab):
        w2 = jnp.pad(w_t, ((0, Kp - d_model), (0, Vp - vocab)))
        # Padded vocab columns get a huge negative bias: they never win the
        # running max and contribute exp(.) == 0 to the sum.
        b2 = jnp.pad(bias.reshape(1, vocab), ((0, 0), (0, Vp - vocab)),
                     constant_values=-1e30)
    else:
        w2, b2 = w_t, bias.reshape(1, vocab)

    # --- pass 1: streamed un-normalized logits + per-row LSE ----------------
    scratch = [pltpu.VMEM((tm_, 1), jnp.float32),   # running max
               pltpu.VMEM((tm_, 1), jnp.float32)]   # running sum-exp
    if nk > 1:
        scratch.append(pltpu.VMEM((tm_, tn_), jnp.float32))  # K accumulator

    logits_u, lse = pl.pallas_call(
        functools.partial(_logits_lse_kernel, nk=nk, tk=tk_),
        out_shape=(jax.ShapeDtypeStruct((Mp, Vp), out_dtype),
                   jax.ShapeDtypeStruct((Mp, 1), jnp.float32)),
        grid_spec=pltpu.PrefetchScalarGridSpec(
            num_scalar_prefetch=0,
            grid=(ni, nj, nk),
            in_specs=[
                # x: full-K resident, fetched once per row tile (not per j/k).
                pl.BlockSpec((tm_, Kp), lambda i, j, k: (i, 0)),
                pl.BlockSpec((tk_, tn_), lambda i, j, k: (k, j)),
                pl.BlockSpec((1, tn_), lambda i, j, k: (0, j)),
            ],
            out_specs=[
                pl.BlockSpec((tm_, tn_), lambda i, j, k: (i, j)),
                pl.BlockSpec((tm_, 1), lambda i, j, k: (i, 0)),
            ],
            scratch_shapes=scratch,
        ),
        compiler_params=pltpu.CompilerParams(
            # Rows are independent (megacore-shardable); vocab carries the LSE
            # state and K carries the accumulator -> arbitrary.
            dimension_semantics=("parallel", "arbitrary", "arbitrary"),
            vmem_limit_bytes=int(budget),
        ),
    )(x2, w2, b2)

    # --- pass 2: subtract the LSE, in place over the pass-1 buffer ----------
    out = pl.pallas_call(
        _normalize_kernel,
        out_shape=jax.ShapeDtypeStruct((Mp, Vp), out_dtype),
        grid_spec=pltpu.PrefetchScalarGridSpec(
            num_scalar_prefetch=0,
            grid=(ni, nj),
            in_specs=[
                pl.BlockSpec((tm_, tn_), lambda i, j: (i, j)),
                pl.BlockSpec((tm_, 1), lambda i, j: (i, 0)),
            ],
            out_specs=pl.BlockSpec((tm_, tn_), lambda i, j: (i, j)),
        ),
        compiler_params=pltpu.CompilerParams(
            dimension_semantics=("parallel", "parallel"),
            vmem_limit_bytes=int(budget),
        ),
        input_output_aliases={0: 0},
    )(logits_u, lse)

    if (Mp, Vp) != (M, vocab):
        out = out[:M, :vocab]
    return out.reshape(lead + (vocab,))


if __name__ == "__main__":
    key = jax.random.PRNGKey(0)

    def make_case(k, batch, seq, d_model, vocab):
        kx, kw, kb = jax.random.split(k, 3)
        x = jax.random.normal(kx, (batch, seq, d_model), dtype=jnp.float32)
        # nn.Linear params: weight (vocab, d_model), bias (vocab,)
        weight = jax.random.normal(kw, (vocab, d_model), dtype=jnp.float32) * (d_model ** -0.5)
        bias = jax.random.normal(kb, (vocab,), dtype=jnp.float32) * 0.01
        return x, weight, bias

    k1, k2 = jax.random.split(key)

    # Case 1: ragged shapes, auto tiles (exercises M/K/V padding paths).
    x, weight, bias = make_case(k1, 2, 7, 32, 200)
    w_t = jnp.asarray(weight.T)                 # transpose once; cache in real use
    ref = jax.nn.log_softmax(x @ weight.T + bias, axis=-1)
    out = jax.block_until_ready(transformer_prediction_layer(x, w_t, bias))
    assert out.shape == ref.shape
    assert jnp.allclose(out, ref, atol=1e-4, rtol=1e-4), "mismatch (case 1)"

    # Case 2: explicit small tiles -> multi row/vocab/K tiles, K-accumulator
    # path, streamed output blocks and in-place normalization pass.
    x, weight, bias = make_case(k2, 2, 5, 192, 384)
    w_t = jnp.asarray(weight.T)
    ref = jax.nn.log_softmax(x @ weight.T + bias, axis=-1)
    out = jax.block_until_ready(
        transformer_prediction_layer(x, w_t, bias, tm=8, tn=128, tk=128))
    assert jnp.allclose(out, ref, atol=1e-4, rtol=1e-4), "mismatch (case 2)"

    print("KERNEL_OK")
</pallas_src>

<mosaic_0001>
module attributes {stable_mosaic.version = 11 : i64} {
  func.func @_normalize_kernel(%arg0: i32, %arg1: i32, %arg2: memref<16x256xf32, #tpu.memory_space<vmem>>, %arg3: memref<16x1xf32, #tpu.memory_space<vmem>>, %arg4: memref<16x256xf32, #tpu.memory_space<vmem>>) attributes {dimension_semantics = [#tpu.dimension_semantics<parallel>, #tpu.dimension_semantics<parallel>], iteration_bounds = array<i64: 1, 1>, scalar_prefetch = 0 : i64, scratch_operands = 0 : i64, tpu.core_type = #tpu.core_type<tc>, window_params = [{transform_indices = @transform_0, window_bounds = array<i64: 16, 256>}, {transform_indices = @transform_1, window_bounds = array<i64: 16, 1>}, {transform_indices = @transform_2, window_bounds = array<i64: 16, 256>}]} {
    %c0 = arith.constant 0 : index
    %c0_0 = arith.constant 0 : index
    %0 = vector.load %arg2[%c0, %c0_0] : memref<16x256xf32, #tpu.memory_space<vmem>>, vector<16x256xf32>
    %c0_1 = arith.constant 0 : index
    %c0_2 = arith.constant 0 : index
    %1 = vector.load %arg3[%c0_1, %c0_2] : memref<16x1xf32, #tpu.memory_space<vmem>>, vector<16x1xf32>
    %2 = vector.broadcast %1 : vector<16x1xf32> to vector<16x256xf32>
    %3 = arith.subf %0, %2 : vector<16x256xf32>
    %c0_3 = arith.constant 0 : index
    %c0_4 = arith.constant 0 : index
    %4 = vector.load %arg4[%c0_3, %c0_4] : memref<16x256xf32, #tpu.memory_space<vmem>>, vector<16x256xf32>
    tpu.vector_store %arg4[%c0_3, %c0_4], %3 {strides = array<i32>} : memref<16x256xf32, #tpu.memory_space<vmem>>, vector<16x256xf32>,
    return
  }
  func.func @transform_0(%arg0: i32, %arg1: i32) -> (i32, i32) {
    %c0_i32 = arith.constant 0 : i32
    return %arg0, %arg1 : i32, i32
  }
  func.func @transform_1(%arg0: i32, %arg1: i32) -> (i32, i32) {
    %c0_i32 = arith.constant 0 : i32
    %c0_i32_0 = arith.constant 0 : i32
    return %arg0, %c0_i32 : i32, i32
  }
  func.func @transform_2(%arg0: i32, %arg1: i32) -> (i32, i32) {
    %c0_i32 = arith.constant 0 : i32
    return %arg0, %arg1 : i32, i32
  }
}

module attributes {stable_mosaic.version = 11 : i64} {
  func.func @_logits_lse_kernel(%arg0: i32, %arg1: i32, %arg2: i32, %arg3: memref<16x128xf32, #tpu.memory_space<vmem>>, %arg4: memref<128x256xf32, #tpu.memory_space<vmem>>, %arg5: memref<1x256xf32, #tpu.memory_space<vmem>>, %arg6: memref<16x256xf32, #tpu.memory_space<vmem>>, %arg7: memref<16x1xf32, #tpu.memory_space<vmem>>, %arg8: memref<16x1xf32, #tpu.memory_space<vmem>>, %arg9: memref<16x1xf32, #tpu.memory_space<vmem>>) attributes {dimension_semantics = [#tpu.dimension_semantics<parallel>, #tpu.dimension_semantics<arbitrary>, #tpu.dimension_semantics<arbitrary>], iteration_bounds = array<i64: 1, 1, 1>, scalar_prefetch = 0 : i64, scratch_operands = 2 : i64, tpu.core_type = #tpu.core_type<tc>, window_params = [{transform_indices = @transform_0, window_bounds = array<i64: 16, 128>}, {transform_indices = @transform_1, window_bounds = array<i64: 128, 256>}, {transform_indices = @transform_2, window_bounds = array<i64: 1, 256>}, {transform_indices = @transform_3, window_bounds = array<i64: 16, 256>}, {transform_indices = @transform_4, window_bounds = array<i64: 16, 1>}]} {
    %c0 = arith.constant 0 : index
    %c0_0 = arith.constant 0 : index
    %0 = vector.load %arg3[%c0, %c0_0] : memref<16x128xf32, #tpu.memory_space<vmem>>, vector<16x128xf32>
    %c0_1 = arith.constant 0 : index
    %c0_2 = arith.constant 0 : index
    %1 = vector.load %arg4[%c0_1, %c0_2] : memref<128x256xf32, #tpu.memory_space<vmem>>, vector<128x256xf32>
    %cst = arith.constant dense<0.000000e+00> : vector<16x256xf32>
    %2 = tpu.matmul %0, %1, %cst {dimension_numbers = #tpu.dot_dimension_numbers<[1], [0], [0], [1], [0, 0, 1, 1], [], []>} : vector<16x128xf32>, vector<128x256xf32>, vector<16x256xf32> -> vector<16x256xf32>
    %c0_3 = arith.constant 0 : index
    %c0_4 = arith.constant 0 : index
    %3 = vector.load %arg5[%c0_3, %c0_4] : memref<1x256xf32, #tpu.memory_space<vmem>>, vector<1x256xf32>
    %4 = vector.broadcast %3 : vector<1x256xf32> to vector<16x256xf32>
    %5 = arith.addf %2, %4 : vector<16x256xf32>
    %c0_i32 = arith.constant 0 : i32
    %6 = arith.cmpi eq, %arg1, %c0_i32 : i32
    %7 = arith.extui %6 : i1 to i32
    %c0_i32_5 = arith.constant 0 : i32
    %8 = arith.cmpi ne, %7, %c0_i32_5 : i32
    scf.if %8 {
      %cst_20 = arith.constant 0xFF800000 : f32
      %29 = vector.broadcast %cst_20 : f32 to vector<16x1xf32>
      %c0_21 = arith.constant 0 : index
      %c0_22 = arith.constant 0 : index
      %30 = vector.load %arg8[%c0_21, %c0_22] : memref<16x1xf32, #tpu.memory_space<vmem>>, vector<16x1xf32>
      tpu.vector_store %arg8[%c0_21, %c0_22], %29 {strides = array<i32>} : memref<16x1xf32, #tpu.memory_space<vmem>>, vector<16x1xf32>,
      %cst_23 = arith.constant 0.000000e+00 : f32
      %31 = vector.broadcast %cst_23 : f32 to vector<16x1xf32>
      %c0_24 = arith.constant 0 : index
      %c0_25 = arith.constant 0 : index
      %32 = vector.load %arg9[%c0_24, %c0_25] : memref<16x1xf32, #tpu.memory_space<vmem>>, vector<16x1xf32>
      tpu.vector_store %arg9[%c0_24, %c0_25], %31 {strides = array<i32>} : memref<16x1xf32, #tpu.memory_space<vmem>>, vector<16x1xf32>,
    } else {
    }
    %c0_6 = arith.constant 0 : index
    %c0_7 = arith.constant 0 : index
    %9 = vector.load %arg8[%c0_6, %c0_7] : memref<16x1xf32, #tpu.memory_space<vmem>>, vector<16x1xf32>
    %cst_8 = arith.constant dense<0xFF800000> : vector<16xf32>
    %10 = vector.multi_reduction <maximumf>, %5, %cst_8 [1] : vector<16x256xf32> to vector<16xf32>
    %11 = vector.shape_cast %10 : vector<16xf32> to vector<16x1xf32>
    %12 = arith.maximumf %9, %11 : vector<16x1xf32>
    %c0_9 = arith.constant 0 : index
    %c0_10 = arith.constant 0 : index
    %13 = vector.load %arg9[%c0_9, %c0_10] : memref<16x1xf32, #tpu.memory_space<vmem>>, vector<16x1xf32>
    %14 = arith.subf %9, %12 : vector<16x1xf32>
    %15 = math.exp %14 : vector<16x1xf32>
    %16 = arith.mulf %13, %15 : vector<16x1xf32>
    %17 = vector.broadcast %12 : vector<16x1xf32> to vector<16x256xf32>
    %18 = arith.subf %5, %17 : vector<16x256xf32>
    %19 = math.exp %18 : vector<16x256xf32>
    %cst_11 = arith.constant dense<0.000000e+00> : vector<16xf32>
    %20 = vector.multi_reduction <add>, %19, %cst_11 [1] : vector<16x256xf32> to vector<16xf32>
    %21 = vector.shape_cast %20 : vector<16xf32> to vector<16x1xf32>
    %22 = arith.addf %16, %21 : vector<16x1xf32>
    %c0_12 = arith.constant 0 : index
    %c0_13 = arith.constant 0 : index
    %23 = vector.load %arg9[%c0_12, %c0_13] : memref<16x1xf32, #tpu.memory_space<vmem>>, vector<16x1xf32>
    tpu.vector_store %arg9[%c0_12, %c0_13], %22 {strides = array<i32>} : memref<16x1xf32, #tpu.memory_space<vmem>>, vector<16x1xf32>,
    %c0_14 = arith.constant 0 : index
    %c0_15 = arith.constant 0 : index
    %24 = vector.load %arg8[%c0_14, %c0_15] : memref<16x1xf32, #tpu.memory_space<vmem>>, vector<16x1xf32>
    tpu.vector_store %arg8[%c0_14, %c0_15], %12 {strides = array<i32>} : memref<16x1xf32, #tpu.memory_space<vmem>>, vector<16x1xf32>,
    %c0_16 = arith.constant 0 : index
    %c0_17 = arith.constant 0 : index
    %25 = vector.load %arg6[%c0_16, %c0_17] : memref<16x256xf32, #tpu.memory_space<vmem>>, vector<16x256xf32>
    tpu.vector_store %arg6[%c0_16, %c0_17], %5 {strides = array<i32>} : memref<16x256xf32, #tpu.memory_space<vmem>>, vector<16x256xf32>,
    %c0_i32_18 = arith.constant 0 : i32
    %26 = arith.cmpi eq, %arg1, %c0_i32_18 : i32
    %27 = arith.extui %26 : i1 to i32
    %c0_i32_19 = arith.constant 0 : i32
    %28 = arith.cmpi ne, %27, %c0_i32_19 : i32
    scf.if %28 {
      %c0_20 = arith.constant 0 : index
      %c0_21 = arith.constant 0 : index
      %29 = vector.load %arg8[%c0_20, %c0_21] : memref<16x1xf32, #tpu.memory_space<vmem>>, vector<16x1xf32>
      %c0_22 = arith.constant 0 : index
      %c0_23 = arith.constant 0 : index
      %30 = vector.load %arg9[%c0_22, %c0_23] : memref<16x1xf32, #tpu.memory_space<vmem>>, vector<16x1xf32>
      %31 = math.log %30 : vector<16x1xf32>
      %32 = arith.addf %29, %31 : vector<16x1xf32>
      %c0_24 = arith.constant 0 : index
      %c0_25 = arith.constant 0 : index
      %33 = vector.load %arg7[%c0_24, %c0_25] : memref<16x1xf32, #tpu.memory_space<vmem>>, vector<16x1xf32>
      tpu.vector_store %arg7[%c0_24, %c0_25], %32 {strides = array<i32>} : memref<16x1xf32, #tpu.memory_space<vmem>>, vector<16x1xf32>,
    } else {
    }
    return
  }
  func.func @transform_0(%arg0: i32, %arg1: i32, %arg2: i32) -> (i32, i32) {
    %c0_i32 = arith.constant 0 : i32
    %c0_i32_0 = arith.constant 0 : i32
    return %arg0, %c0_i32 : i32, i32
  }
  func.func @transform_1(%arg0: i32, %arg1: i32, %arg2: i32) -> (i32, i32) {
    %c0_i32 = arith.constant 0 : i32
    return %arg2, %arg1 : i32, i32
  }
  func.func @transform_2(%arg0: i32, %arg1: i32, %arg2: i32) -> (i32, i32) {
    %c0_i32 = arith.constant 0 : i32
    %c0_i32_0 = arith.constant 0 : i32
    return %c0_i32, %arg1 : i32, i32
  }
  func.func @transform_3(%arg0: i32, %arg1: i32, %arg2: i32) -> (i32, i32) {
    %c0_i32 = arith.constant 0 : i32
    return %arg0, %arg1 : i32, i32
  }
  func.func @transform_4(%arg0: i32, %arg1: i32, %arg2: i32) -> (i32, i32) {
    %c0_i32 = arith.constant 0 : i32
    %c0_i32_0 = arith.constant 0 : i32
    return %arg0, %c0_i32 : i32, i32
  }
}

</mosaic_0001>

<llo_original>
// kernel: transformer_prediction_layer.3
$region0: #{transformer_prediction_layer.3}
  #allocation0 [shape = 'u32[]', space=smem, size = 0x4, offset = 0x4, fixed_abs, tag = 'smem constant byte address 0x4 - core index']
  #allocation1 [shape = 'u32[72,128]{1,0:T(1,128)}', space=vmem, size = 0x9000, scoped, tag = 'internal scratch']
  %s0 = inlined_call_operand.vmem [shape: f32[16,256], index: 0, kind: input, shape index: {}, may-alias: {0,2}]
  %s1 = inlined_call_operand.vmem [shape: f32[16,1], index: 1, kind: input, shape index: {}]
  %s2 = inlined_call_operand.vmem [shape: f32[16,256], index: 2, kind: output, shape index: {}, may-alias: {0,2}]
  %s3 = sld [smem:[#allocation0]]
  $region18: #{transformer_prediction_layer.3} parent=0
    _
  %s5 = ssub.s32 1, %s3
  %s6 = scalar_select 0, %s5, %s3
  // Predicated region
  $region2: #{transformer_prediction_layer.3} parent=0 // pred_check
    _
  $region3: #{transformer_prediction_layer.3} parent=0 // pred_check_branch
    %8 = sbr.rel (0) target = $region5
  $region4: #{transformer_prediction_layer.3} parent=0 // pred_region
    _
  $region5: #{transformer_prediction_layer.3} parent=0 // pred_fallthru
    _
  // Predicated region
  $region6: #{transformer_prediction_layer.3} parent=0 // pred_check
    _
  $region7: #{transformer_prediction_layer.3} parent=0 // pred_check_branch
    %10 = sbr.rel (0) target = $region9
  $region8: #{transformer_prediction_layer.3} parent=0 // pred_region
    _
  $region9: #{transformer_prediction_layer.3} parent=0 // pred_fallthru
    _
  %v11 = vld [vmem:[%s0] sm:$0xff]
  %v12 = vld [vmem:[%s0 + $0x8] sm:$0xff]
  %v13 = vld [vmem:[%s0 + $0x10] sm:$0xff]
  %v14 = vld [vmem:[%s0 + $0x18] sm:$0xff]
  %v15 = vld [vmem:[%s1] sm:$0xff]
  %v16 = vld [vmem:[%s1 + $0x8] sm:$0xff]
  %18 = vset.pattern.permute.xlu0 0
  %19 = vperm.xlu0 %18, %v15
  %v20 = vpop.permute.xlu0 %19
  %23 = vset.pattern.permute.xlu0 0
  %24 = vperm.xlu0 %23, %v16
  %v25 = vpop.permute.xlu0 %24
  %v27 = vsub.f32 %v11, %v20
  %v28 = vsub.f32 %v12, %v20
  %v29 = vsub.f32 %v13, %v25
  %v30 = vsub.f32 %v14, %v25
  %31 = vst [vmem:[%s2] sm:$0xff] %v27
  %32 = vst [vmem:[%s2 + $0x8] sm:$0xff] %v28
  %33 = vst [vmem:[%s2 + $0x10] sm:$0xff] %v29
  %34 = vst [vmem:[%s2 + $0x18] sm:$0xff] %v30
  // Predicated region
  $region10: #{transformer_prediction_layer.3} parent=0 // pred_check
    _
  $region11: #{transformer_prediction_layer.3} parent=0 // pred_check_branch
    %36 = sbr.rel (0) target = $region13
  $region12: #{transformer_prediction_layer.3} parent=0 // pred_region
    _
  $region13: #{transformer_prediction_layer.3} parent=0 // pred_fallthru
    _
  // Predicated region
  $region14: #{transformer_prediction_layer.3} parent=0 // pred_check
    _
  $region15: #{transformer_prediction_layer.3} parent=0 // pred_check_branch
    %38 = sbr.rel (0) target = $region17
  $region16: #{transformer_prediction_layer.3} parent=0 // pred_region
    _
  $region17: #{transformer_prediction_layer.3} parent=0 // pred_fallthru
    _

// kernel: transformer_prediction_layer.2
$region0: #{transformer_prediction_layer.2}
  #allocation0 [shape = 'u32[]', space=smem, size = 0x4, offset = 0x4, fixed_abs, tag = 'smem constant byte address 0x4 - core index']
  #allocation1 [shape = 'u32[72,128]{1,0:T(1,128)}', space=vmem, size = 0x9000, scoped, tag = 'internal scratch']
  #allocation2 [shape = 'f32[16,1]{1,0:T(8,128)}', space=vmem, size = 0x2000, scoped, tag = 'scratch operand']
  #allocation3 [shape = 'f32[16,1]{1,0:T(8,128)}', space=vmem, size = 0x2000, scoped, tag = 'scratch operand']
  %s0 = inlined_call_operand.vmem [shape: f32[16,128], index: 0, kind: input, shape index: {}]
  %s1 = inlined_call_operand.vmem [shape: f32[128,256], index: 1, kind: input, shape index: {}]
  %s2 = inlined_call_operand.vmem [shape: f32[1,256], index: 2, kind: input, shape index: {}]
  %s3 = inlined_call_operand.vmem [shape: f32[16,256], index: 3, kind: output, shape index: {0}]
  %s4 = inlined_call_operand.vmem [shape: f32[16,1], index: 4, kind: output, shape index: {1}]
  %5 = xla_tuple %s3, %s4
  %s6 = sld [smem:[#allocation0]]
  $region38: #{transformer_prediction_layer.2} parent=0
    _
  %s8 = ssub.s32 1, %s6
  %s9 = scalar_select 0, %s8, %s6
  // Predicated region
  $region2: #{transformer_prediction_layer.2} parent=0 // pred_check
    _
  $region3: #{transformer_prediction_layer.2} parent=0 // pred_check_branch
    %11 = sbr.rel (0) target = $region5
  $region4: #{transformer_prediction_layer.2} parent=0 // pred_region
    _
  $region5: #{transformer_prediction_layer.2} parent=0 // pred_fallthru
    _
  // Predicated region
  $region6: #{transformer_prediction_layer.2} parent=0 // pred_check
    _
  $region7: #{transformer_prediction_layer.2} parent=0 // pred_check_branch
    %13 = sbr.rel (0) target = $region9
  $region8: #{transformer_prediction_layer.2} parent=0 // pred_region
    _
  $region9: #{transformer_prediction_layer.2} parent=0 // pred_fallthru
    _
  // Predicated region
  $region10: #{transformer_prediction_layer.2} parent=0 // pred_check
    _
  $region11: #{transformer_prediction_layer.2} parent=0 // pred_check_branch
    %15 = sbr.rel (0) target = $region13
  $region12: #{transformer_prediction_layer.2} parent=0 // pred_region
    _
  $region13: #{transformer_prediction_layer.2} parent=0 // pred_fallthru
    _
  %v16 = vld [vmem:[%s0] sm:$0xff]
  %v17 = vld [vmem:[%s0 + $0x8] sm:$0xff]
  %v18 = vld [vmem:[%s1] sm:$0xff]
  %v19 = vld [vmem:[%s1 + $0x8] sm:$0xff]
  %v20 = vld [vmem:[%s1 + $0x10] sm:$0xff]
  %v21 = vld [vmem:[%s1 + $0x18] sm:$0xff]
  %v22 = vld [vmem:[%s1 + $0x20] sm:$0xff]
  %v23 = vld [vmem:[%s1 + $0x28] sm:$0xff]
  %v24 = vld [vmem:[%s1 + $0x30] sm:$0xff]
  %v25 = vld [vmem:[%s1 + $0x38] sm:$0xff]
  %v26 = vld [vmem:[%s1 + $0x40] sm:$0xff]
  %v27 = vld [vmem:[%s1 + $0x48] sm:$0xff]
  %v28 = vld [vmem:[%s1 + $0x50] sm:$0xff]
  %v29 = vld [vmem:[%s1 + $0x58] sm:$0xff]
  %v30 = vld [vmem:[%s1 + $0x60] sm:$0xff]
  %v31 = vld [vmem:[%s1 + $0x68] sm:$0xff]
  %v32 = vld [vmem:[%s1 + $0x70] sm:$0xff]
  %v33 = vld [vmem:[%s1 + $0x78] sm:$0xff]
  %v34 = vld [vmem:[%s1 + $0x80] sm:$0xff]
  %v35 = vld [vmem:[%s1 + $0x88] sm:$0xff]
  %v36 = vld [vmem:[%s1 + $0x90] sm:$0xff]
  %v37 = vld [vmem:[%s1 + $0x98] sm:$0xff]
  %v38 = vld [vmem:[%s1 + $0xa0] sm:$0xff]
  %v39 = vld [vmem:[%s1 + $0xa8] sm:$0xff]
  %v40 = vld [vmem:[%s1 + $0xb0] sm:$0xff]
  %v41 = vld [vmem:[%s1 + $0xb8] sm:$0xff]
  %v42 = vld [vmem:[%s1 + $0xc0] sm:$0xff]
  %v43 = vld [vmem:[%s1 + $0xc8] sm:$0xff]
  %v44 = vld [vmem:[%s1 + $0xd0] sm:$0xff]
  %v45 = vld [vmem:[%s1 + $0xd8] sm:$0xff]
  %v46 = vld [vmem:[%s1 + $0xe0] sm:$0xff]
  %v47 = vld [vmem:[%s1 + $0xe8] sm:$0xff]
  %v48 = vld [vmem:[%s1 + $0xf0] sm:$0xff]
  %v49 = vld [vmem:[%s1 + $0xf8] sm:$0xff]
  %v50 = vld [vmem:[%s2] sm:$0x3]
  %v52 = vperm.slane %v50, 0
  %v53 = vperm.slane %v50, 1
  %56 = vmatpush.msra.mxu0 %v48
  %57 = vmatpush.msra.mxu0 %v46
  %58 = vmatpush.msra.mxu0 %v44
  %59 = vmatpush.msra.mxu0 %v42
  %60 = vmatpush.msra.mxu0 %v40
  %61 = vmatpush.msra.mxu0 %v38
  %62 = vmatpush.msra.mxu0 %v36
  %63 = vmatpush.msra.mxu0 %v34
  %64 = vmatpush.msra.mxu0 %v32
  %65 = vmatpush.msra.mxu0 %v30
  %66 = vmatpush.msra.mxu0 %v28
  %67 = vmatpush.msra.mxu0 %v26
  %68 = vmatpush.msra.mxu0 %v24
  %69 = vmatpush.msra.mxu0 %v22
  %70 = vmatpush.msra.mxu0 %v20
  %71 = vmatpush.msra.mxu0 %v18
  %72 = vmatmul.f32.gmra.mxu0 %v16
  %v73 = vpop.f32.mrf.mxu0
  %v74 = vadd.f32 %v52, %v73
  %75 = vmatmul.f32.gmra.mxu0 %v17
  %v76 = vpop.f32.mrf.mxu0
  %v77 = vadd.f32 %v52, %v76
  %78 = vdwg.mxu0
  %79 = vmatpush.msra.mxu0 %v49
  %80 = vmatpush.msra.mxu0 %v47
  %81 = vmatpush.msra.mxu0 %v45
  %82 = vmatpush.msra.mxu0 %v43
  %83 = vmatpush.msra.mxu0 %v41
  %84 = vmatpush.msra.mxu0 %v39
  %85 = vmatpush.msra.mxu0 %v37
  %86 = vmatpush.msra.mxu0 %v35
  %87 = vmatpush.msra.mxu0 %v33
  %88 = vmatpush.msra.mxu0 %v31
  %89 = vmatpush.msra.mxu0 %v29
  %90 = vmatpush.msra.mxu0 %v27
  %91 = vmatpush.msra.mxu0 %v25
  %92 = vmatpush.msra.mxu0 %v23
  %93 = vmatpush.msra.mxu0 %v21
  %94 = vmatpush.msra.mxu0 %v19
  %95 = vmatmul.f32.gmra.mxu0 %v16
  %v96 = vpop.f32.mrf.mxu0
  %v97 = vadd.f32 %v53, %v96
  %98 = vmatmul.f32.gmra.mxu0 %v17
  %v99 = vpop.f32.mrf.mxu0
  %v100 = vadd.f32 %v53, %v99
  %101 = vdwg.mxu0
  %p102 = scmp.eq.s32.totalorder 0, 0
  // Predicated region
  $region14: #{transformer_prediction_layer.2} parent=0 // pred_check
    %p103 = pneg %p102
  $region15: #{transformer_prediction_layer.2} parent=0 // pred_check_branch
    %105 = sbr.rel (%p103) target = $region17
  $region16: #{transformer_prediction_layer.2} parent=0 // pred_region
    %vm106 = vcmask 7168
    %107 = vst.msk [vmem:[#allocation2] sm:$0xff] %vm106, -inf
    %108 = vst.msk [vmem:[#allocation2 + $0x8] sm:$0xff] %vm106, -inf
    %109 = vst.msk [vmem:[#allocation3] sm:$0xff] %vm106, 0.0
    %110 = vst.msk [vmem:[#allocation3 + $0x8] sm:$0xff] %vm106, 0.0
  $region17: #{transformer_prediction_layer.2} parent=0 // pred_fallthru
    _
  %v111 = vld [vmem:[#allocation2] sm:$0xff]
  %v112 = vld [vmem:[#allocation2 + $0x8] sm:$0xff]
  %v113 = vmax.f32 %v74, %v97
  %114 = vmax.xlane.f32.xlu0 %v113
  %v115 = vpop.xlane.xlu0 %114
  %v116 = vmax.f32 %v77, %v100
  %117 = vmax.xlane.f32.xlu0 %v116
  %v118 = vpop.xlane.xlu0 %117
  %v119 = vmax.f32 %v111, %v115
  %v120 = vmax.f32 %v112, %v118
  %v121 = vld [vmem:[#allocation3] sm:$0xff]
  %v122 = vld [vmem:[#allocation3 + $0x8] sm:$0xff]
  %v123 = vsub.f32 %v111, %v119
  %v124 = vsub.f32 %v112, %v120
  %v125 = vmul.f32 %v123, 1.442695
  %v126 = vpow.pop %v125
  %v127 = vmul.f32 %v124, 1.442695
  %v128 = vpow.pop %v127
  %v129 = vmul.f32 %v121, %v126
  %v130 = vmul.f32 %v122, %v128
  %132 = vset.pattern.permute.xlu0 0
  %133 = vperm.xlu0 %132, %v119
  %v134 = vpop.permute.xlu0 %133
  %137 = vset.pattern.permute.xlu0 0
  %138 = vperm.xlu0 %137, %v120
  %v139 = vpop.permute.xlu0 %138
  %v141 = vsub.f32 %v74, %v134
  %v142 = vsub.f32 %v97, %v134
  %v143 = vsub.f32 %v77, %v139
  %v144 = vsub.f32 %v100, %v139
  %v145 = vmul.f32 %v141, 1.442695
  %v146 = vpow.pop %v145
  %v147 = vmul.f32 %v142, 1.442695
  %v148 = vpow.pop %v147
  %v149 = vmul.f32 %v143, 1.442695
  %v150 = vpow.pop %v149
  %v151 = vmul.f32 %v144, 1.442695
  %v152 = vpow.pop %v151
  %v153 = vadd.f32 %v146, %v148
  %154 = vadd.xlane.f32.xlu0 %v153
  %v155 = vpop.xlane.xlu0 %154
  %v156 = vadd.f32 %v150, %v152
  %157 = vadd.xlane.f32.xlu0 %v156
  %v158 = vpop.xlane.xlu0 %157
  %v159 = vadd.f32 %v129, %v155
  %v160 = vadd.f32 %v130, %v158
  %vm161 = vcmask 7168
  %162 = vst.msk [vmem:[#allocation3] sm:$0xff] %vm161, %v159
  %163 = vst.msk [vmem:[#allocation3 + $0x8] sm:$0xff] %vm161, %v160
  %164 = vst.msk [vmem:[#allocation2] sm:$0xff] %vm161, %v119
  %165 = vst.msk [vmem:[#allocation2 + $0x8] sm:$0xff] %vm161, %v120
  %166 = vst [vmem:[%s3] sm:$0xff] %v74
  %167 = vst [vmem:[%s3 + $0x8] sm:$0xff] %v97
  %168 = vst [vmem:[%s3 + $0x10] sm:$0xff] %v77
  %169 = vst [vmem:[%s3 + $0x18] sm:$0xff] %v100
  // Predicated region
  $region18: #{transformer_prediction_layer.2} parent=0 // pred_check
    %p170 = pneg %p102
  $region19: #{transformer_prediction_layer.2} parent=0 // pred_check_branch
    %172 = sbr.rel (%p170) target = $region21
  $region20: #{transformer_prediction_layer.2} parent=0 // pred_region
    %v173 = vld [vmem:[#allocation2] sm:$0xff]
    %v174 = vld [vmem:[#allocation2 + $0x8] sm:$0xff]
    %v175 = vld [vmem:[#allocation3] sm:$0xff]
    %v176 = vld [vmem:[#allocation3 + $0x8] sm:$0xff]
    %v177 = vlog2.pop %v175
    %v178 = vmul.f32 %v177, 0.6931472
    %v179 = vlog2.pop %v176
    %v180 = vmul.f32 %v179, 0.6931472
    %v181 = vadd.f32 %v173, %v178
    %v182 = vadd.f32 %v174, %v180
    %183 = vst.msk [vmem:[%s4] sm:$0xff] %vm161, %v181
    %184 = vst.msk [vmem:[%s4 + $0x8] sm:$0xff] %vm161, %v182
  $region21: #{transformer_prediction_layer.2} parent=0 // pred_fallthru
    _
  // Predicated region
  $region22: #{transformer_prediction_layer.2} parent=0 // pred_check
    _
  $region23: #{transformer_prediction_layer.2} parent=0 // pred_check_branch
    %186 = sbr.rel (0) target = $region25
  $region24: #{transformer_prediction_layer.2} parent=0 // pred_region
    _
  $region25: #{transformer_prediction_layer.2} parent=0 // pred_fallthru
    _
  // Predicated region
  $region26: #{transformer_prediction_layer.2} parent=0 // pred_check
    _
  $region27: #{transformer_prediction_layer.2} parent=0 // pred_check_branch
    %188 = sbr.rel (0) target = $region29
  $region28: #{transformer_prediction_layer.2} parent=0 // pred_region
    _
  $region29: #{transformer_prediction_layer.2} parent=0 // pred_fallthru
    _
  // Predicated region
  $region30: #{transformer_prediction_layer.2} parent=0 // pred_check
    _
  $region31: #{transformer_prediction_layer.2} parent=0 // pred_check_branch
    %190 = sbr.rel (0) target = $region33
  $region32: #{transformer_prediction_layer.2} parent=0 // pred_region
    _
  $region33: #{transformer_prediction_layer.2} parent=0 // pred_fallthru
    _
  // Predicated region
  $region34: #{transformer_prediction_layer.2} parent=0 // pred_check
    _
  $region35: #{transformer_prediction_layer.2} parent=0 // pred_check_branch
    %192 = sbr.rel (0) target = $region37
  $region36: #{transformer_prediction_layer.2} parent=0 // pred_region
    _
  $region37: #{transformer_prediction_layer.2} parent=0 // pred_fallthru
    _

</llo_original>
